<compile_context>
chip_gen: v7x
topology: tpu7x:2x2x1
jax: 0.10.0
libtpu: 0.0.40
codegen_flags: <defaults>
</compile_context>

<pallas_src>
import jax
import jax.numpy as jnp
from jax.experimental import pallas as pl
from jax.experimental.pallas import tpu as pltpu


def _clip_embedding_kernel(tok_ref, emb_hbm, pos_ref, o_ref, sem):
    """One grid step = one batch row.

    tok_ref: (B*T,) int32 token ids in SMEM (scalar prefetch, 1-D to avoid
             2-D SMEM padding).
    emb_hbm: (V, D) token-embedding table, raw HBM ref (pl.ANY).
    pos_ref: (T, D) position embedding, VMEM-resident across all grid steps.
    o_ref:   (T, D) output block for this batch row (leading batch dim
             squeezed by the BlockSpec); gather DMAs land directly here.
    sem:     (1,) DMA semaphore shared by all in-flight row gathers.
    """
    b = pl.program_id(0)
    T, D = o_ref.shape
    V = emb_hbm.shape[0]
    base = b * T

    # ---- Phase 1: read ALL token ids from SMEM and issue ALL gather DMAs
    # before any .wait().  Duplicate of the immediately preceding token
    # (padding runs) skips its DMA entirely.
    copies = []  # (descriptor, do_gather-or-None) per t
    prev_row = None
    for t in range(T):
        # Clamp untrusted ids so the DMA source slice stays in-bounds.
        # (nn.Embedding would raise on OOB ids; here they are remapped.)
        row = jnp.clip(tok_ref[base + t], 0, V - 1)
        do_gather = None if t == 0 else (row != prev_row)

        cp = pltpu.make_async_copy(
            emb_hbm.at[pl.ds(row, 1), :],     # (1, D) source row in HBM
            o_ref.at[pl.ds(t, 1), :],         # (1, D) destination row in VMEM
            sem.at[0],
        )
        if do_gather is None:
            cp.start()
        else:
            @pl.when(do_gather)
            def _(cp=cp):
                cp.start()

        copies.append((cp, do_gather))
        prev_row = row

    # ---- Phase 2: wait for every issued gather.  All transfers share one
    # semaphore and all data is consumed only after the last wait, so the
    # completion order of individual rows does not matter.
    for cp, do_gather in copies:
        if do_gather is None:
            cp.wait()
        else:
            @pl.when(do_gather)
            def _(cp=cp):
                cp.wait()

    # ---- Phase 3: fill skipped (duplicate) rows with a VMEM row copy from
    # the previous row.  Sequential stores, so runs of duplicates propagate.
    for t in range(1, T):
        _, do_gather = copies[t]

        @pl.when(jnp.logical_not(do_gather))
        def _(t=t):
            o_ref[pl.ds(t, 1), :] = o_ref[pl.ds(t - 1, 1), :]

    # ---- Phase 4: one dense (T, D) add + store (unmasked, lane-dense vst).
    o_ref[...] = o_ref[...] + pos_ref[...].astype(o_ref.dtype)


def clip_embedding(tokens, emb_table, pos_emb):
    """tokens: (B, T) int32; emb_table: (V, D); pos_emb: (T, D) -> (B, T, D)."""
    B, T = tokens.shape
    V, D = emb_table.shape
    assert pos_emb.shape == (T, D)

    tokens_flat = tokens.reshape(-1).astype(jnp.int32)  # 1-D SMEM prefetch

    grid_spec = pltpu.PrefetchScalarGridSpec(
        num_scalar_prefetch=1,  # token ids land in SMEM, read inside kernel
        grid=(B,),
        in_specs=[
            # Token-embedding table stays in HBM; rows gathered by in-kernel DMA.
            pl.BlockSpec(memory_space=pl.ANY),
            # Position embedding: same block every step -> resident in VMEM.
            pl.BlockSpec((T, D), lambda b, tok: (0, 0)),
        ],
        # Leading batch dim squeezed: kernel sees a dense (T, D) output slab.
        out_specs=pl.BlockSpec((None, T, D), lambda b, tok: (b, 0, 0)),
        scratch_shapes=[
            pltpu.SemaphoreType.DMA((1,)),  # single shared gather semaphore
        ],
    )

    return pl.pallas_call(
        _clip_embedding_kernel,
        out_shape=jax.ShapeDtypeStruct((B, T, D), emb_table.dtype),
        grid_spec=grid_spec,
        compiler_params=pltpu.CompilerParams(
            dimension_semantics=("parallel",),  # independent batch rows
        ),
    )(tokens_flat, emb_table, pos_emb)


if __name__ == "__main__":
    # Small, lane-friendly shapes consistent with the module's forward.
    n_vocab, n_embd, n_token, batch = 64, 128, 8, 2

    key = jax.random.PRNGKey(0)
    k_tok, k_emb, k_pos = jax.random.split(key, 3)

    emb_table = jax.random.normal(k_emb, (n_vocab, n_embd), dtype=jnp.float32)
    pos_emb = 0.02 * jax.random.normal(k_pos, (n_token, n_embd), dtype=jnp.float32)

    tokens = jax.random.randint(k_tok, (batch, n_token), 0, n_vocab, dtype=jnp.int32)
    # Mimic CLIP padding (trailing repeated pad/EOS id) so the duplicate-skip
    # path is actually exercised and verified.
    tokens = tokens.at[:, n_token // 2:].set(0)

    out = clip_embedding(tokens, emb_table, pos_emb)
    out = jax.block_until_ready(out)

    # Pure-JAX reference: x = token_embedding(tokens) + position_embedding
    ref = emb_table[tokens] + pos_emb[None, :, :]
    assert out.shape == (batch, n_token, n_embd)
    assert jnp.allclose(out, ref, atol=1e-6, rtol=1e-6)

    print("KERNEL_OK")
</pallas_src>

<mosaic_0001>
module attributes {stable_mosaic.version = 11 : i64} {
  func.func @_clip_embedding_kernel(%arg0: i32, %arg1: memref<16xi32, #tpu.memory_space<smem>>, %arg2: memref<64x128xf32, #tpu.memory_space<any>>, %arg3: memref<8x128xf32, #tpu.memory_space<vmem>>, %arg4: memref<1x8x128xf32, #tpu.memory_space<vmem>>, %arg5: memref<1x!tpu.dma_semaphore, #tpu.memory_space<semaphore_mem>>) attributes {dimension_semantics = [#tpu.dimension_semantics<parallel>], iteration_bounds = array<i64: 2>, scalar_prefetch = 1 : i64, scratch_operands = 1 : i64, tpu.core_type = #tpu.core_type<tc>, window_params = [{}, {pipeline_mode = #tpu.pipeline_mode<synchronous>, transform_indices = @transform_1, window_bounds = array<i64: 8, 128>}, {transform_indices = @transform_2, window_bounds = array<i64: 1, 8, 128>}]} {
    %c8_i32 = arith.constant 8 : i32
    %0 = arith.muli %arg0, %c8_i32 : i32
    %c0_i32 = arith.constant 0 : i32
    %1 = arith.addi %0, %c0_i32 : i32
    %2 = arith.index_cast %1 : i32 to index
    %3 = memref.load %arg1[%2] : memref<16xi32, #tpu.memory_space<smem>>
    %c0_i32_0 = arith.constant 0 : i32
    %c63_i32 = arith.constant 63 : i32
    %4 = arith.maxsi %c0_i32_0, %3 : i32
    %5 = arith.minsi %c63_i32, %4 : i32
    %c0_i32_1 = arith.constant 0 : i32
    %c0_i32_2 = arith.constant 0 : i32
    %6 = tpu.memref_slice %arg2[%5, %c0_i32_2] : memref<64x128xf32, #tpu.memory_space<any>> -> memref<1x128xf32, #tpu.memory_space<any>>
    %c0_i32_3 = arith.constant 0 : i32
    %c0_i32_4 = arith.constant 0 : i32
    %c0_i32_5 = arith.constant 0 : i32
    %7 = tpu.memref_slice %arg4[%c0_i32_3, %c0_i32_4, %c0_i32_5] : memref<1x8x128xf32, #tpu.memory_space<vmem>> -> memref<1x1x128xf32, #tpu.memory_space<vmem>>
    %8 = tpu.memref_squeeze %7 : memref<1x1x128xf32, #tpu.memory_space<vmem>> -> memref<1x128xf32, #tpu.memory_space<vmem>>
    %9 = tpu.memref_slice %arg5[%c0_i32_1] : memref<1x!tpu.dma_semaphore, #tpu.memory_space<semaphore_mem>> -> memref<1x!tpu.dma_semaphore, #tpu.memory_space<semaphore_mem>>
    %10 = tpu.memref_squeeze %9 : memref<1x!tpu.dma_semaphore, #tpu.memory_space<semaphore_mem>> -> memref<!tpu.dma_semaphore, #tpu.memory_space<semaphore_mem>>
    tpu.enqueue_dma source(%6 : memref<1x128xf32, #tpu.memory_space<any>>) target(%8 : memref<1x128xf32, #tpu.memory_space<vmem>>) target_semaphore(%10 : memref<!tpu.dma_semaphore, #tpu.memory_space<semaphore_mem>>)
    %c1_i32 = arith.constant 1 : i32
    %11 = arith.addi %0, %c1_i32 : i32
    %12 = arith.index_cast %11 : i32 to index
    %13 = memref.load %arg1[%12] : memref<16xi32, #tpu.memory_space<smem>>
    %c0_i32_6 = arith.constant 0 : i32
    %c63_i32_7 = arith.constant 63 : i32
    %14 = arith.maxsi %c0_i32_6, %13 : i32
    %15 = arith.minsi %c63_i32_7, %14 : i32
    %16 = arith.cmpi ne, %15, %5 : i32
    %17 = arith.extui %16 : i1 to i32
    %c0_i32_8 = arith.constant 0 : i32
    %c0_i32_9 = arith.constant 0 : i32
    %18 = arith.cmpi ne, %17, %c0_i32_9 : i32
    scf.if %18 {
      %c0_i32_73 = arith.constant 0 : i32
      %114 = tpu.memref_slice %arg2[%15, %c0_i32_73] : memref<64x128xf32, #tpu.memory_space<any>> -> memref<1x128xf32, #tpu.memory_space<any>>
      %c0_i32_74 = arith.constant 0 : i32
      %c1_i32_75 = arith.constant 1 : i32
      %c0_i32_76 = arith.constant 0 : i32
      %115 = tpu.memref_slice %arg4[%c0_i32_74, %c1_i32_75, %c0_i32_76] : memref<1x8x128xf32, #tpu.memory_space<vmem>> -> memref<1x1x128xf32, #tpu.memory_space<vmem>>
      %116 = tpu.memref_squeeze %115 : memref<1x1x128xf32, #tpu.memory_space<vmem>> -> memref<1x128xf32, #tpu.memory_space<vmem>>
      %117 = tpu.memref_slice %arg5[%c0_i32_8] : memref<1x!tpu.dma_semaphore, #tpu.memory_space<semaphore_mem>> -> memref<1x!tpu.dma_semaphore, #tpu.memory_space<semaphore_mem>>
      %118 = tpu.memref_squeeze %117 : memref<1x!tpu.dma_semaphore, #tpu.memory_space<semaphore_mem>> -> memref<!tpu.dma_semaphore, #tpu.memory_space<semaphore_mem>>
      tpu.enqueue_dma source(%114 : memref<1x128xf32, #tpu.memory_space<any>>) target(%116 : memref<1x128xf32, #tpu.memory_space<vmem>>) target_semaphore(%118 : memref<!tpu.dma_semaphore, #tpu.memory_space<semaphore_mem>>)
    } else {
    }
    %c2_i32 = arith.constant 2 : i32
    %19 = arith.addi %0, %c2_i32 : i32
    %20 = arith.index_cast %19 : i32 to index
    %21 = memref.load %arg1[%20] : memref<16xi32, #tpu.memory_space<smem>>
    %c0_i32_10 = arith.constant 0 : i32
    %c63_i32_11 = arith.constant 63 : i32
    %22 = arith.maxsi %c0_i32_10, %21 : i32
    %23 = arith.minsi %c63_i32_11, %22 : i32
    %24 = arith.cmpi ne, %23, %15 : i32
    %25 = arith.extui %24 : i1 to i32
    %c0_i32_12 = arith.constant 0 : i32
    %c0_i32_13 = arith.constant 0 : i32
    %26 = arith.cmpi ne, %25, %c0_i32_13 : i32
    scf.if %26 {
      %c0_i32_73 = arith.constant 0 : i32
      %114 = tpu.memref_slice %arg2[%23, %c0_i32_73] : memref<64x128xf32, #tpu.memory_space<any>> -> memref<1x128xf32, #tpu.memory_space<any>>
      %c0_i32_74 = arith.constant 0 : i32
      %c2_i32_75 = arith.constant 2 : i32
      %c0_i32_76 = arith.constant 0 : i32
      %115 = tpu.memref_slice %arg4[%c0_i32_74, %c2_i32_75, %c0_i32_76] : memref<1x8x128xf32, #tpu.memory_space<vmem>> -> memref<1x1x128xf32, #tpu.memory_space<vmem>>
      %116 = tpu.memref_squeeze %115 : memref<1x1x128xf32, #tpu.memory_space<vmem>> -> memref<1x128xf32, #tpu.memory_space<vmem>>
      %117 = tpu.memref_slice %arg5[%c0_i32_12] : memref<1x!tpu.dma_semaphore, #tpu.memory_space<semaphore_mem>> -> memref<1x!tpu.dma_semaphore, #tpu.memory_space<semaphore_mem>>
      %118 = tpu.memref_squeeze %117 : memref<1x!tpu.dma_semaphore, #tpu.memory_space<semaphore_mem>> -> memref<!tpu.dma_semaphore, #tpu.memory_space<semaphore_mem>>
      tpu.enqueue_dma source(%114 : memref<1x128xf32, #tpu.memory_space<any>>) target(%116 : memref<1x128xf32, #tpu.memory_space<vmem>>) target_semaphore(%118 : memref<!tpu.dma_semaphore, #tpu.memory_space<semaphore_mem>>)
    } else {
    }
    %c3_i32 = arith.constant 3 : i32
    %27 = arith.addi %0, %c3_i32 : i32
    %28 = arith.index_cast %27 : i32 to index
    %29 = memref.load %arg1[%28] : memref<16xi32, #tpu.memory_space<smem>>
    %c0_i32_14 = arith.constant 0 : i32
    %c63_i32_15 = arith.constant 63 : i32
    %30 = arith.maxsi %c0_i32_14, %29 : i32
    %31 = arith.minsi %c63_i32_15, %30 : i32
    %32 = arith.cmpi ne, %31, %23 : i32
    %33 = arith.extui %32 : i1 to i32
    %c0_i32_16 = arith.constant 0 : i32
    %c0_i32_17 = arith.constant 0 : i32
    %34 = arith.cmpi ne, %33, %c0_i32_17 : i32
    scf.if %34 {
      %c0_i32_73 = arith.constant 0 : i32
      %114 = tpu.memref_slice %arg2[%31, %c0_i32_73] : memref<64x128xf32, #tpu.memory_space<any>> -> memref<1x128xf32, #tpu.memory_space<any>>
      %c0_i32_74 = arith.constant 0 : i32
      %c3_i32_75 = arith.constant 3 : i32
      %c0_i32_76 = arith.constant 0 : i32
      %115 = tpu.memref_slice %arg4[%c0_i32_74, %c3_i32_75, %c0_i32_76] : memref<1x8x128xf32, #tpu.memory_space<vmem>> -> memref<1x1x128xf32, #tpu.memory_space<vmem>>
      %116 = tpu.memref_squeeze %115 : memref<1x1x128xf32, #tpu.memory_space<vmem>> -> memref<1x128xf32, #tpu.memory_space<vmem>>
      %117 = tpu.memref_slice %arg5[%c0_i32_16] : memref<1x!tpu.dma_semaphore, #tpu.memory_space<semaphore_mem>> -> memref<1x!tpu.dma_semaphore, #tpu.memory_space<semaphore_mem>>
      %118 = tpu.memref_squeeze %117 : memref<1x!tpu.dma_semaphore, #tpu.memory_space<semaphore_mem>> -> memref<!tpu.dma_semaphore, #tpu.memory_space<semaphore_mem>>
      tpu.enqueue_dma source(%114 : memref<1x128xf32, #tpu.memory_space<any>>) target(%116 : memref<1x128xf32, #tpu.memory_space<vmem>>) target_semaphore(%118 : memref<!tpu.dma_semaphore, #tpu.memory_space<semaphore_mem>>)
    } else {
    }
    %c4_i32 = arith.constant 4 : i32
    %35 = arith.addi %0, %c4_i32 : i32
    %36 = arith.index_cast %35 : i32 to index
    %37 = memref.load %arg1[%36] : memref<16xi32, #tpu.memory_space<smem>>
    %c0_i32_18 = arith.constant 0 : i32
    %c63_i32_19 = arith.constant 63 : i32
    %38 = arith.maxsi %c0_i32_18, %37 : i32
    %39 = arith.minsi %c63_i32_19, %38 : i32
    %40 = arith.cmpi ne, %39, %31 : i32
    %41 = arith.extui %40 : i1 to i32
    %c0_i32_20 = arith.constant 0 : i32
    %c0_i32_21 = arith.constant 0 : i32
    %42 = arith.cmpi ne, %41, %c0_i32_21 : i32
    scf.if %42 {
      %c0_i32_73 = arith.constant 0 : i32
      %114 = tpu.memref_slice %arg2[%39, %c0_i32_73] : memref<64x128xf32, #tpu.memory_space<any>> -> memref<1x128xf32, #tpu.memory_space<any>>
      %c0_i32_74 = arith.constant 0 : i32
      %c4_i32_75 = arith.constant 4 : i32
      %c0_i32_76 = arith.constant 0 : i32
      %115 = tpu.memref_slice %arg4[%c0_i32_74, %c4_i32_75, %c0_i32_76] : memref<1x8x128xf32, #tpu.memory_space<vmem>> -> memref<1x1x128xf32, #tpu.memory_space<vmem>>
      %116 = tpu.memref_squeeze %115 : memref<1x1x128xf32, #tpu.memory_space<vmem>> -> memref<1x128xf32, #tpu.memory_space<vmem>>
      %117 = tpu.memref_slice %arg5[%c0_i32_20] : memref<1x!tpu.dma_semaphore, #tpu.memory_space<semaphore_mem>> -> memref<1x!tpu.dma_semaphore, #tpu.memory_space<semaphore_mem>>
      %118 = tpu.memref_squeeze %117 : memref<1x!tpu.dma_semaphore, #tpu.memory_space<semaphore_mem>> -> memref<!tpu.dma_semaphore, #tpu.memory_space<semaphore_mem>>
      tpu.enqueue_dma source(%114 : memref<1x128xf32, #tpu.memory_space<any>>) target(%116 : memref<1x128xf32, #tpu.memory_space<vmem>>) target_semaphore(%118 : memref<!tpu.dma_semaphore, #tpu.memory_space<semaphore_mem>>)
    } else {
    }
    %c5_i32 = arith.constant 5 : i32
    %43 = arith.addi %0, %c5_i32 : i32
    %44 = arith.index_cast %43 : i32 to index
    %45 = memref.load %arg1[%44] : memref<16xi32, #tpu.memory_space<smem>>
    %c0_i32_22 = arith.constant 0 : i32
    %c63_i32_23 = arith.constant 63 : i32
    %46 = arith.maxsi %c0_i32_22, %45 : i32
    %47 = arith.minsi %c63_i32_23, %46 : i32
    %48 = arith.cmpi ne, %47, %39 : i32
    %49 = arith.extui %48 : i1 to i32
    %c0_i32_24 = arith.constant 0 : i32
    %c0_i32_25 = arith.constant 0 : i32
    %50 = arith.cmpi ne, %49, %c0_i32_25 : i32
    scf.if %50 {
      %c0_i32_73 = arith.constant 0 : i32
      %114 = tpu.memref_slice %arg2[%47, %c0_i32_73] : memref<64x128xf32, #tpu.memory_space<any>> -> memref<1x128xf32, #tpu.memory_space<any>>
      %c0_i32_74 = arith.constant 0 : i32
      %c5_i32_75 = arith.constant 5 : i32
      %c0_i32_76 = arith.constant 0 : i32
      %115 = tpu.memref_slice %arg4[%c0_i32_74, %c5_i32_75, %c0_i32_76] : memref<1x8x128xf32, #tpu.memory_space<vmem>> -> memref<1x1x128xf32, #tpu.memory_space<vmem>>
      %116 = tpu.memref_squeeze %115 : memref<1x1x128xf32, #tpu.memory_space<vmem>> -> memref<1x128xf32, #tpu.memory_space<vmem>>
      %117 = tpu.memref_slice %arg5[%c0_i32_24] : memref<1x!tpu.dma_semaphore, #tpu.memory_space<semaphore_mem>> -> memref<1x!tpu.dma_semaphore, #tpu.memory_space<semaphore_mem>>
      %118 = tpu.memref_squeeze %117 : memref<1x!tpu.dma_semaphore, #tpu.memory_space<semaphore_mem>> -> memref<!tpu.dma_semaphore, #tpu.memory_space<semaphore_mem>>
      tpu.enqueue_dma source(%114 : memref<1x128xf32, #tpu.memory_space<any>>) target(%116 : memref<1x128xf32, #tpu.memory_space<vmem>>) target_semaphore(%118 : memref<!tpu.dma_semaphore, #tpu.memory_space<semaphore_mem>>)
    } else {
    }
    %c6_i32 = arith.constant 6 : i32
    %51 = arith.addi %0, %c6_i32 : i32
    %52 = arith.index_cast %51 : i32 to index
    %53 = memref.load %arg1[%52] : memref<16xi32, #tpu.memory_space<smem>>
    %c0_i32_26 = arith.constant 0 : i32
    %c63_i32_27 = arith.constant 63 : i32
    %54 = arith.maxsi %c0_i32_26, %53 : i32
    %55 = arith.minsi %c63_i32_27, %54 : i32
    %56 = arith.cmpi ne, %55, %47 : i32
    %57 = arith.extui %56 : i1 to i32
    %c0_i32_28 = arith.constant 0 : i32
    %c0_i32_29 = arith.constant 0 : i32
    %58 = arith.cmpi ne, %57, %c0_i32_29 : i32
    scf.if %58 {
      %c0_i32_73 = arith.constant 0 : i32
      %114 = tpu.memref_slice %arg2[%55, %c0_i32_73] : memref<64x128xf32, #tpu.memory_space<any>> -> memref<1x128xf32, #tpu.memory_space<any>>
      %c0_i32_74 = arith.constant 0 : i32
      %c6_i32_75 = arith.constant 6 : i32
      %c0_i32_76 = arith.constant 0 : i32
      %115 = tpu.memref_slice %arg4[%c0_i32_74, %c6_i32_75, %c0_i32_76] : memref<1x8x128xf32, #tpu.memory_space<vmem>> -> memref<1x1x128xf32, #tpu.memory_space<vmem>>
      %116 = tpu.memref_squeeze %115 : memref<1x1x128xf32, #tpu.memory_space<vmem>> -> memref<1x128xf32, #tpu.memory_space<vmem>>
      %117 = tpu.memref_slice %arg5[%c0_i32_28] : memref<1x!tpu.dma_semaphore, #tpu.memory_space<semaphore_mem>> -> memref<1x!tpu.dma_semaphore, #tpu.memory_space<semaphore_mem>>
      %118 = tpu.memref_squeeze %117 : memref<1x!tpu.dma_semaphore, #tpu.memory_space<semaphore_mem>> -> memref<!tpu.dma_semaphore, #tpu.memory_space<semaphore_mem>>
      tpu.enqueue_dma source(%114 : memref<1x128xf32, #tpu.memory_space<any>>) target(%116 : memref<1x128xf32, #tpu.memory_space<vmem>>) target_semaphore(%118 : memref<!tpu.dma_semaphore, #tpu.memory_space<semaphore_mem>>)
    } else {
    }
    %c7_i32 = arith.constant 7 : i32
    %59 = arith.addi %0, %c7_i32 : i32
    %60 = arith.index_cast %59 : i32 to index
    %61 = memref.load %arg1[%60] : memref<16xi32, #tpu.memory_space<smem>>
    %c0_i32_30 = arith.constant 0 : i32
    %c63_i32_31 = arith.constant 63 : i32
    %62 = arith.maxsi %c0_i32_30, %61 : i32
    %63 = arith.minsi %c63_i32_31, %62 : i32
    %64 = arith.cmpi ne, %63, %55 : i32
    %65 = arith.extui %64 : i1 to i32
    %c0_i32_32 = arith.constant 0 : i32
    %c0_i32_33 = arith.constant 0 : i32
    %66 = arith.cmpi ne, %65, %c0_i32_33 : i32
    scf.if %66 {
      %c0_i32_73 = arith.constant 0 : i32
      %114 = tpu.memref_slice %arg2[%63, %c0_i32_73] : memref<64x128xf32, #tpu.memory_space<any>> -> memref<1x128xf32, #tpu.memory_space<any>>
      %c0_i32_74 = arith.constant 0 : i32
      %c7_i32_75 = arith.constant 7 : i32
      %c0_i32_76 = arith.constant 0 : i32
      %115 = tpu.memref_slice %arg4[%c0_i32_74, %c7_i32_75, %c0_i32_76] : memref<1x8x128xf32, #tpu.memory_space<vmem>> -> memref<1x1x128xf32, #tpu.memory_space<vmem>>
      %116 = tpu.memref_squeeze %115 : memref<1x1x128xf32, #tpu.memory_space<vmem>> -> memref<1x128xf32, #tpu.memory_space<vmem>>
      %117 = tpu.memref_slice %arg5[%c0_i32_32] : memref<1x!tpu.dma_semaphore, #tpu.memory_space<semaphore_mem>> -> memref<1x!tpu.dma_semaphore, #tpu.memory_space<semaphore_mem>>
      %118 = tpu.memref_squeeze %117 : memref<1x!tpu.dma_semaphore, #tpu.memory_space<semaphore_mem>> -> memref<!tpu.dma_semaphore, #tpu.memory_space<semaphore_mem>>
      tpu.enqueue_dma source(%114 : memref<1x128xf32, #tpu.memory_space<any>>) target(%116 : memref<1x128xf32, #tpu.memory_space<vmem>>) target_semaphore(%118 : memref<!tpu.dma_semaphore, #tpu.memory_space<semaphore_mem>>)
    } else {
    }
    %c0_i32_34 = arith.constant 0 : i32
    %c0_i32_35 = arith.constant 0 : i32
    %67 = tpu.memref_slice %arg2[%5, %c0_i32_35] : memref<64x128xf32, #tpu.memory_space<any>> -> memref<1x128xf32, #tpu.memory_space<any>>
    %c0_i32_36 = arith.constant 0 : i32
    %c0_i32_37 = arith.constant 0 : i32
    %c0_i32_38 = arith.constant 0 : i32
    %68 = tpu.memref_slice %arg4[%c0_i32_36, %c0_i32_37, %c0_i32_38] : memref<1x8x128xf32, #tpu.memory_space<vmem>> -> memref<1x1x128xf32, #tpu.memory_space<vmem>>
    %69 = tpu.memref_squeeze %68 : memref<1x1x128xf32, #tpu.memory_space<vmem>> -> memref<1x128xf32, #tpu.memory_space<vmem>>
    %70 = tpu.memref_slice %arg5[%c0_i32_34] : memref<1x!tpu.dma_semaphore, #tpu.memory_space<semaphore_mem>> -> memref<1x!tpu.dma_semaphore, #tpu.memory_space<semaphore_mem>>
    %71 = tpu.memref_squeeze %70 : memref<1x!tpu.dma_semaphore, #tpu.memory_space<semaphore_mem>> -> memref<!tpu.dma_semaphore, #tpu.memory_space<semaphore_mem>>
    tpu.wait_dma2 semaphore(%71 : memref<!tpu.dma_semaphore, #tpu.memory_space<semaphore_mem>>) src(%67 : memref<1x128xf32, #tpu.memory_space<any>>) dst(%69 : memref<1x128xf32, #tpu.memory_space<vmem>>)
    %72 = arith.extui %16 : i1 to i32
    %c0_i32_39 = arith.constant 0 : i32
    %c0_i32_40 = arith.constant 0 : i32
    %73 = arith.cmpi ne, %72, %c0_i32_40 : i32
    scf.if %73 {
      %c0_i32_73 = arith.constant 0 : i32
      %114 = tpu.memref_slice %arg2[%15, %c0_i32_73] : memref<64x128xf32, #tpu.memory_space<any>> -> memref<1x128xf32, #tpu.memory_space<any>>
      %c0_i32_74 = arith.constant 0 : i32
      %c1_i32_75 = arith.constant 1 : i32
      %c0_i32_76 = arith.constant 0 : i32
      %115 = tpu.memref_slice %arg4[%c0_i32_74, %c1_i32_75, %c0_i32_76] : memref<1x8x128xf32, #tpu.memory_space<vmem>> -> memref<1x1x128xf32, #tpu.memory_space<vmem>>
      %116 = tpu.memref_squeeze %115 : memref<1x1x128xf32, #tpu.memory_space<vmem>> -> memref<1x128xf32, #tpu.memory_space<vmem>>
      %117 = tpu.memref_slice %arg5[%c0_i32_39] : memref<1x!tpu.dma_semaphore, #tpu.memory_space<semaphore_mem>> -> memref<1x!tpu.dma_semaphore, #tpu.memory_space<semaphore_mem>>
      %118 = tpu.memref_squeeze %117 : memref<1x!tpu.dma_semaphore, #tpu.memory_space<semaphore_mem>> -> memref<!tpu.dma_semaphore, #tpu.memory_space<semaphore_mem>>
      tpu.wait_dma2 semaphore(%118 : memref<!tpu.dma_semaphore, #tpu.memory_space<semaphore_mem>>) src(%114 : memref<1x128xf32, #tpu.memory_space<any>>) dst(%116 : memref<1x128xf32, #tpu.memory_space<vmem>>)
    } else {
    }
    %74 = arith.extui %24 : i1 to i32
    %c0_i32_41 = arith.constant 0 : i32
    %c0_i32_42 = arith.constant 0 : i32
    %75 = arith.cmpi ne, %74, %c0_i32_42 : i32
    scf.if %75 {
      %c0_i32_73 = arith.constant 0 : i32
      %114 = tpu.memref_slice %arg2[%23, %c0_i32_73] : memref<64x128xf32, #tpu.memory_space<any>> -> memref<1x128xf32, #tpu.memory_space<any>>
      %c0_i32_74 = arith.constant 0 : i32
      %c2_i32_75 = arith.constant 2 : i32
      %c0_i32_76 = arith.constant 0 : i32
      %115 = tpu.memref_slice %arg4[%c0_i32_74, %c2_i32_75, %c0_i32_76] : memref<1x8x128xf32, #tpu.memory_space<vmem>> -> memref<1x1x128xf32, #tpu.memory_space<vmem>>
      %116 = tpu.memref_squeeze %115 : memref<1x1x128xf32, #tpu.memory_space<vmem>> -> memref<1x128xf32, #tpu.memory_space<vmem>>
      %117 = tpu.memref_slice %arg5[%c0_i32_41] : memref<1x!tpu.dma_semaphore, #tpu.memory_space<semaphore_mem>> -> memref<1x!tpu.dma_semaphore, #tpu.memory_space<semaphore_mem>>
      %118 = tpu.memref_squeeze %117 : memref<1x!tpu.dma_semaphore, #tpu.memory_space<semaphore_mem>> -> memref<!tpu.dma_semaphore, #tpu.memory_space<semaphore_mem>>
      tpu.wait_dma2 semaphore(%118 : memref<!tpu.dma_semaphore, #tpu.memory_space<semaphore_mem>>) src(%114 : memref<1x128xf32, #tpu.memory_space<any>>) dst(%116 : memref<1x128xf32, #tpu.memory_space<vmem>>)
    } else {
    }
    %76 = arith.extui %32 : i1 to i32
    %c0_i32_43 = arith.constant 0 : i32
    %c0_i32_44 = arith.constant 0 : i32
    %77 = arith.cmpi ne, %76, %c0_i32_44 : i32
    scf.if %77 {
      %c0_i32_73 = arith.constant 0 : i32
      %114 = tpu.memref_slice %arg2[%31, %c0_i32_73] : memref<64x128xf32, #tpu.memory_space<any>> -> memref<1x128xf32, #tpu.memory_space<any>>
      %c0_i32_74 = arith.constant 0 : i32
      %c3_i32_75 = arith.constant 3 : i32
      %c0_i32_76 = arith.constant 0 : i32
      %115 = tpu.memref_slice %arg4[%c0_i32_74, %c3_i32_75, %c0_i32_76] : memref<1x8x128xf32, #tpu.memory_space<vmem>> -> memref<1x1x128xf32, #tpu.memory_space<vmem>>
      %116 = tpu.memref_squeeze %115 : memref<1x1x128xf32, #tpu.memory_space<vmem>> -> memref<1x128xf32, #tpu.memory_space<vmem>>
      %117 = tpu.memref_slice %arg5[%c0_i32_43] : memref<1x!tpu.dma_semaphore, #tpu.memory_space<semaphore_mem>> -> memref<1x!tpu.dma_semaphore, #tpu.memory_space<semaphore_mem>>
      %118 = tpu.memref_squeeze %117 : memref<1x!tpu.dma_semaphore, #tpu.memory_space<semaphore_mem>> -> memref<!tpu.dma_semaphore, #tpu.memory_space<semaphore_mem>>
      tpu.wait_dma2 semaphore(%118 : memref<!tpu.dma_semaphore, #tpu.memory_space<semaphore_mem>>) src(%114 : memref<1x128xf32, #tpu.memory_space<any>>) dst(%116 : memref<1x128xf32, #tpu.memory_space<vmem>>)
    } else {
    }
    %78 = arith.extui %40 : i1 to i32
    %c0_i32_45 = arith.constant 0 : i32
    %c0_i32_46 = arith.constant 0 : i32
    %79 = arith.cmpi ne, %78, %c0_i32_46 : i32
    scf.if %79 {
      %c0_i32_73 = arith.constant 0 : i32
      %114 = tpu.memref_slice %arg2[%39, %c0_i32_73] : memref<64x128xf32, #tpu.memory_space<any>> -> memref<1x128xf32, #tpu.memory_space<any>>
      %c0_i32_74 = arith.constant 0 : i32
      %c4_i32_75 = arith.constant 4 : i32
      %c0_i32_76 = arith.constant 0 : i32
      %115 = tpu.memref_slice %arg4[%c0_i32_74, %c4_i32_75, %c0_i32_76] : memref<1x8x128xf32, #tpu.memory_space<vmem>> -> memref<1x1x128xf32, #tpu.memory_space<vmem>>
      %116 = tpu.memref_squeeze %115 : memref<1x1x128xf32, #tpu.memory_space<vmem>> -> memref<1x128xf32, #tpu.memory_space<vmem>>
      %117 = tpu.memref_slice %arg5[%c0_i32_45] : memref<1x!tpu.dma_semaphore, #tpu.memory_space<semaphore_mem>> -> memref<1x!tpu.dma_semaphore, #tpu.memory_space<semaphore_mem>>
      %118 = tpu.memref_squeeze %117 : memref<1x!tpu.dma_semaphore, #tpu.memory_space<semaphore_mem>> -> memref<!tpu.dma_semaphore, #tpu.memory_space<semaphore_mem>>
      tpu.wait_dma2 semaphore(%118 : memref<!tpu.dma_semaphore, #tpu.memory_space<semaphore_mem>>) src(%114 : memref<1x128xf32, #tpu.memory_space<any>>) dst(%116 : memref<1x128xf32, #tpu.memory_space<vmem>>)
    } else {
    }
    %80 = arith.extui %48 : i1 to i32
    %c0_i32_47 = arith.constant 0 : i32
    %c0_i32_48 = arith.constant 0 : i32
    %81 = arith.cmpi ne, %80, %c0_i32_48 : i32
    scf.if %81 {
      %c0_i32_73 = arith.constant 0 : i32
      %114 = tpu.memref_slice %arg2[%47, %c0_i32_73] : memref<64x128xf32, #tpu.memory_space<any>> -> memref<1x128xf32, #tpu.memory_space<any>>
      %c0_i32_74 = arith.constant 0 : i32
      %c5_i32_75 = arith.constant 5 : i32
      %c0_i32_76 = arith.constant 0 : i32
      %115 = tpu.memref_slice %arg4[%c0_i32_74, %c5_i32_75, %c0_i32_76] : memref<1x8x128xf32, #tpu.memory_space<vmem>> -> memref<1x1x128xf32, #tpu.memory_space<vmem>>
      %116 = tpu.memref_squeeze %115 : memref<1x1x128xf32, #tpu.memory_space<vmem>> -> memref<1x128xf32, #tpu.memory_space<vmem>>
      %117 = tpu.memref_slice %arg5[%c0_i32_47] : memref<1x!tpu.dma_semaphore, #tpu.memory_space<semaphore_mem>> -> memref<1x!tpu.dma_semaphore, #tpu.memory_space<semaphore_mem>>
      %118 = tpu.memref_squeeze %117 : memref<1x!tpu.dma_semaphore, #tpu.memory_space<semaphore_mem>> -> memref<!tpu.dma_semaphore, #tpu.memory_space<semaphore_mem>>
      tpu.wait_dma2 semaphore(%118 : memref<!tpu.dma_semaphore, #tpu.memory_space<semaphore_mem>>) src(%114 : memref<1x128xf32, #tpu.memory_space<any>>) dst(%116 : memref<1x128xf32, #tpu.memory_space<vmem>>)
    } else {
    }
    %82 = arith.extui %56 : i1 to i32
    %c0_i32_49 = arith.constant 0 : i32
    %c0_i32_50 = arith.constant 0 : i32
    %83 = arith.cmpi ne, %82, %c0_i32_50 : i32
    scf.if %83 {
      %c0_i32_73 = arith.constant 0 : i32
      %114 = tpu.memref_slice %arg2[%55, %c0_i32_73] : memref<64x128xf32, #tpu.memory_space<any>> -> memref<1x128xf32, #tpu.memory_space<any>>
      %c0_i32_74 = arith.constant 0 : i32
      %c6_i32_75 = arith.constant 6 : i32
      %c0_i32_76 = arith.constant 0 : i32
      %115 = tpu.memref_slice %arg4[%c0_i32_74, %c6_i32_75, %c0_i32_76] : memref<1x8x128xf32, #tpu.memory_space<vmem>> -> memref<1x1x128xf32, #tpu.memory_space<vmem>>
      %116 = tpu.memref_squeeze %115 : memref<1x1x128xf32, #tpu.memory_space<vmem>> -> memref<1x128xf32, #tpu.memory_space<vmem>>
      %117 = tpu.memref_slice %arg5[%c0_i32_49] : memref<1x!tpu.dma_semaphore, #tpu.memory_space<semaphore_mem>> -> memref<1x!tpu.dma_semaphore, #tpu.memory_space<semaphore_mem>>
      %118 = tpu.memref_squeeze %117 : memref<1x!tpu.dma_semaphore, #tpu.memory_space<semaphore_mem>> -> memref<!tpu.dma_semaphore, #tpu.memory_space<semaphore_mem>>
      tpu.wait_dma2 semaphore(%118 : memref<!tpu.dma_semaphore, #tpu.memory_space<semaphore_mem>>) src(%114 : memref<1x128xf32, #tpu.memory_space<any>>) dst(%116 : memref<1x128xf32, #tpu.memory_space<vmem>>)
    } else {
    }
    %84 = arith.extui %64 : i1 to i32
    %c0_i32_51 = arith.constant 0 : i32
    %c0_i32_52 = arith.constant 0 : i32
    %85 = arith.cmpi ne, %84, %c0_i32_52 : i32
    scf.if %85 {
      %c0_i32_73 = arith.constant 0 : i32
      %114 = tpu.memref_slice %arg2[%63, %c0_i32_73] : memref<64x128xf32, #tpu.memory_space<any>> -> memref<1x128xf32, #tpu.memory_space<any>>
      %c0_i32_74 = arith.constant 0 : i32
      %c7_i32_75 = arith.constant 7 : i32
      %c0_i32_76 = arith.constant 0 : i32
      %115 = tpu.memref_slice %arg4[%c0_i32_74, %c7_i32_75, %c0_i32_76] : memref<1x8x128xf32, #tpu.memory_space<vmem>> -> memref<1x1x128xf32, #tpu.memory_space<vmem>>
      %116 = tpu.memref_squeeze %115 : memref<1x1x128xf32, #tpu.memory_space<vmem>> -> memref<1x128xf32, #tpu.memory_space<vmem>>
      %117 = tpu.memref_slice %arg5[%c0_i32_51] : memref<1x!tpu.dma_semaphore, #tpu.memory_space<semaphore_mem>> -> memref<1x!tpu.dma_semaphore, #tpu.memory_space<semaphore_mem>>
      %118 = tpu.memref_squeeze %117 : memref<1x!tpu.dma_semaphore, #tpu.memory_space<semaphore_mem>> -> memref<!tpu.dma_semaphore, #tpu.memory_space<semaphore_mem>>
      tpu.wait_dma2 semaphore(%118 : memref<!tpu.dma_semaphore, #tpu.memory_space<semaphore_mem>>) src(%114 : memref<1x128xf32, #tpu.memory_space<any>>) dst(%116 : memref<1x128xf32, #tpu.memory_space<vmem>>)
    } else {
    }
    %true = arith.constant true
    %86 = arith.xori %16, %true : i1
    %87 = arith.extui %86 : i1 to i32
    %c0_i32_53 = arith.constant 0 : i32
    %88 = arith.cmpi ne, %87, %c0_i32_53 : i32
    scf.if %88 {
      %c0_73 = arith.constant 0 : index
      %c0_74 = arith.constant 0 : index
      %c0_75 = arith.constant 0 : index
      %114 = vector.load %arg4[%c0_73, %c0_74, %c0_75] : memref<1x8x128xf32, #tpu.memory_space<vmem>>, vector<1x1x128xf32>
      %115 = vector.shape_cast %114 : vector<1x1x128xf32> to vector<1x128xf32>
      %c0_76 = arith.constant 0 : index
      %c1 = arith.constant 1 : index
      %c0_77 = arith.constant 0 : index
      %116 = vector.load %arg4[%c0_76, %c1, %c0_77] : memref<1x8x128xf32, #tpu.memory_space<vmem>>, vector<1x1x128xf32>
      %117 = vector.shape_cast %116 : vector<1x1x128xf32> to vector<1x128xf32>
      %118 = vector.shape_cast %115 : vector<1x128xf32> to vector<1x1x128xf32>
      tpu.vector_store %arg4[%c0_76, %c1, %c0_77], %118 {strides = array<i32>} : memref<1x8x128xf32, #tpu.memory_space<vmem>>, vector<1x1x128xf32>,
    } else {
    }
    %true_54 = arith.constant true
    %89 = arith.xori %24, %true_54 : i1
    %90 = arith.extui %89 : i1 to i32
    %c0_i32_55 = arith.constant 0 : i32
    %91 = arith.cmpi ne, %90, %c0_i32_55 : i32
    scf.if %91 {
      %c0_73 = arith.constant 0 : index
      %c1 = arith.constant 1 : index
      %c0_74 = arith.constant 0 : index
      %114 = vector.load %arg4[%c0_73, %c1, %c0_74] : memref<1x8x128xf32, #tpu.memory_space<vmem>>, vector<1x1x128xf32>
      %115 = vector.shape_cast %114 : vector<1x1x128xf32> to vector<1x128xf32>
      %c0_75 = arith.constant 0 : index
      %c2 = arith.constant 2 : index
      %c0_76 = arith.constant 0 : index
      %116 = vector.load %arg4[%c0_75, %c2, %c0_76] : memref<1x8x128xf32, #tpu.memory_space<vmem>>, vector<1x1x128xf32>
      %117 = vector.shape_cast %116 : vector<1x1x128xf32> to vector<1x128xf32>
      %118 = vector.shape_cast %115 : vector<1x128xf32> to vector<1x1x128xf32>
      tpu.vector_store %arg4[%c0_75, %c2, %c0_76], %118 {strides = array<i32>} : memref<1x8x128xf32, #tpu.memory_space<vmem>>, vector<1x1x128xf32>,
    } else {
    }
    %true_56 = arith.constant true
    %92 = arith.xori %32, %true_56 : i1
    %93 = arith.extui %92 : i1 to i32
    %c0_i32_57 = arith.constant 0 : i32
    %94 = arith.cmpi ne, %93, %c0_i32_57 : i32
    scf.if %94 {
      %c0_73 = arith.constant 0 : index
      %c2 = arith.constant 2 : index
      %c0_74 = arith.constant 0 : index
      %114 = vector.load %arg4[%c0_73, %c2, %c0_74] : memref<1x8x128xf32, #tpu.memory_space<vmem>>, vector<1x1x128xf32>
      %115 = vector.shape_cast %114 : vector<1x1x128xf32> to vector<1x128xf32>
      %c0_75 = arith.constant 0 : index
      %c3 = arith.constant 3 : index
      %c0_76 = arith.constant 0 : index
      %116 = vector.load %arg4[%c0_75, %c3, %c0_76] : memref<1x8x128xf32, #tpu.memory_space<vmem>>, vector<1x1x128xf32>
      %117 = vector.shape_cast %116 : vector<1x1x128xf32> to vector<1x128xf32>
      %118 = vector.shape_cast %115 : vector<1x128xf32> to vector<1x1x128xf32>
      tpu.vector_store %arg4[%c0_75, %c3, %c0_76], %118 {strides = array<i32>} : memref<1x8x128xf32, #tpu.memory_space<vmem>>, vector<1x1x128xf32>,
    } else {
    }
    %true_58 = arith.constant true
    %95 = arith.xori %40, %true_58 : i1
    %96 = arith.extui %95 : i1 to i32
    %c0_i32_59 = arith.constant 0 : i32
    %97 = arith.cmpi ne, %96, %c0_i32_59 : i32
    scf.if %97 {
      %c0_73 = arith.constant 0 : index
      %c3 = arith.constant 3 : index
      %c0_74 = arith.constant 0 : index
      %114 = vector.load %arg4[%c0_73, %c3, %c0_74] : memref<1x8x128xf32, #tpu.memory_space<vmem>>, vector<1x1x128xf32>
      %115 = vector.shape_cast %114 : vector<1x1x128xf32> to vector<1x128xf32>
      %c0_75 = arith.constant 0 : index
      %c4 = arith.constant 4 : index
      %c0_76 = arith.constant 0 : index
      %116 = vector.load %arg4[%c0_75, %c4, %c0_76] : memref<1x8x128xf32, #tpu.memory_space<vmem>>, vector<1x1x128xf32>
      %117 = vector.shape_cast %116 : vector<1x1x128xf32> to vector<1x128xf32>
      %118 = vector.shape_cast %115 : vector<1x128xf32> to vector<1x1x128xf32>
      tpu.vector_store %arg4[%c0_75, %c4, %c0_76], %118 {strides = array<i32>} : memref<1x8x128xf32, #tpu.memory_space<vmem>>, vector<1x1x128xf32>,
    } else {
    }
    %true_60 = arith.constant true
    %98 = arith.xori %48, %true_60 : i1
    %99 = arith.extui %98 : i1 to i32
    %c0_i32_61 = arith.constant 0 : i32
    %100 = arith.cmpi ne, %99, %c0_i32_61 : i32
    scf.if %100 {
      %c0_73 = arith.constant 0 : index
      %c4 = arith.constant 4 : index
      %c0_74 = arith.constant 0 : index
      %114 = vector.load %arg4[%c0_73, %c4, %c0_74] : memref<1x8x128xf32, #tpu.memory_space<vmem>>, vector<1x1x128xf32>
      %115 = vector.shape_cast %114 : vector<1x1x128xf32> to vector<1x128xf32>
      %c0_75 = arith.constant 0 : index
      %c5 = arith.constant 5 : index
      %c0_76 = arith.constant 0 : index
      %116 = vector.load %arg4[%c0_75, %c5, %c0_76] : memref<1x8x128xf32, #tpu.memory_space<vmem>>, vector<1x1x128xf32>
      %117 = vector.shape_cast %116 : vector<1x1x128xf32> to vector<1x128xf32>
      %118 = vector.shape_cast %115 : vector<1x128xf32> to vector<1x1x128xf32>
      tpu.vector_store %arg4[%c0_75, %c5, %c0_76], %118 {strides = array<i32>} : memref<1x8x128xf32, #tpu.memory_space<vmem>>, vector<1x1x128xf32>,
    } else {
    }
    %true_62 = arith.constant true
    %101 = arith.xori %56, %true_62 : i1
    %102 = arith.extui %101 : i1 to i32
    %c0_i32_63 = arith.constant 0 : i32
    %103 = arith.cmpi ne, %102, %c0_i32_63 : i32
    scf.if %103 {
      %c0_73 = arith.constant 0 : index
      %c5 = arith.constant 5 : index
      %c0_74 = arith.constant 0 : index
      %114 = vector.load %arg4[%c0_73, %c5, %c0_74] : memref<1x8x128xf32, #tpu.memory_space<vmem>>, vector<1x1x128xf32>
      %115 = vector.shape_cast %114 : vector<1x1x128xf32> to vector<1x128xf32>
      %c0_75 = arith.constant 0 : index
      %c6 = arith.constant 6 : index
      %c0_76 = arith.constant 0 : index
      %116 = vector.load %arg4[%c0_75, %c6, %c0_76] : memref<1x8x128xf32, #tpu.memory_space<vmem>>, vector<1x1x128xf32>
      %117 = vector.shape_cast %116 : vector<1x1x128xf32> to vector<1x128xf32>
      %118 = vector.shape_cast %115 : vector<1x128xf32> to vector<1x1x128xf32>
      tpu.vector_store %arg4[%c0_75, %c6, %c0_76], %118 {strides = array<i32>} : memref<1x8x128xf32, #tpu.memory_space<vmem>>, vector<1x1x128xf32>,
    } else {
    }
    %true_64 = arith.constant true
    %104 = arith.xori %64, %true_64 : i1
    %105 = arith.extui %104 : i1 to i32
    %c0_i32_65 = arith.constant 0 : i32
    %106 = arith.cmpi ne, %105, %c0_i32_65 : i32
    scf.if %106 {
      %c0_73 = arith.constant 0 : index
      %c6 = arith.constant 6 : index
      %c0_74 = arith.constant 0 : index
      %114 = vector.load %arg4[%c0_73, %c6, %c0_74] : memref<1x8x128xf32, #tpu.memory_space<vmem>>, vector<1x1x128xf32>
      %115 = vector.shape_cast %114 : vector<1x1x128xf32> to vector<1x128xf32>
      %c0_75 = arith.constant 0 : index
      %c7 = arith.constant 7 : index
      %c0_76 = arith.constant 0 : index
      %116 = vector.load %arg4[%c0_75, %c7, %c0_76] : memref<1x8x128xf32, #tpu.memory_space<vmem>>, vector<1x1x128xf32>
      %117 = vector.shape_cast %116 : vector<1x1x128xf32> to vector<1x128xf32>
      %118 = vector.shape_cast %115 : vector<1x128xf32> to vector<1x1x128xf32>
      tpu.vector_store %arg4[%c0_75, %c7, %c0_76], %118 {strides = array<i32>} : memref<1x8x128xf32, #tpu.memory_space<vmem>>, vector<1x1x128xf32>,
    } else {
    }
    %c0 = arith.constant 0 : index
    %c0_66 = arith.constant 0 : index
    %c0_67 = arith.constant 0 : index
    %107 = vector.load %arg4[%c0, %c0_66, %c0_67] : memref<1x8x128xf32, #tpu.memory_space<vmem>>, vector<1x8x128xf32>
    %108 = vector.shape_cast %107 : vector<1x8x128xf32> to vector<8x128xf32>
    %c0_68 = arith.constant 0 : index
    %c0_69 = arith.constant 0 : index
    %109 = vector.load %arg3[%c0_68, %c0_69] : memref<8x128xf32, #tpu.memory_space<vmem>>, vector<8x128xf32>
    %110 = arith.addf %108, %109 : vector<8x128xf32>
    %c0_70 = arith.constant 0 : index
    %c0_71 = arith.constant 0 : index
    %c0_72 = arith.constant 0 : index
    %111 = vector.load %arg4[%c0_70, %c0_71, %c0_72] : memref<1x8x128xf32, #tpu.memory_space<vmem>>, vector<1x8x128xf32>
    %112 = vector.shape_cast %111 : vector<1x8x128xf32> to vector<8x128xf32>
    %113 = vector.shape_cast %110 : vector<8x128xf32> to vector<1x8x128xf32>
    tpu.vector_store %arg4[%c0_70, %c0_71, %c0_72], %113 {strides = array<i32>} : memref<1x8x128xf32, #tpu.memory_space<vmem>>, vector<1x8x128xf32>,
    return
  }
  func.func @transform_1(%arg0: i32, %arg1: memref<16xi32, #tpu.memory_space<smem>>) -> (i32, i32) {
    %c0_i32 = arith.constant 0 : i32
    %c0_i32_0 = arith.constant 0 : i32
    %c0_i32_1 = arith.constant 0 : i32
    return %c0_i32, %c0_i32_0 : i32, i32
  }
  func.func @transform_2(%arg0: i32, %arg1: memref<16xi32, #tpu.memory_space<smem>>) -> (i32, i32, i32) {
    %c0_i32 = arith.constant 0 : i32
    %c0_i32_0 = arith.constant 0 : i32
    %c0_i32_1 = arith.constant 0 : i32
    return %arg0, %c0_i32, %c0_i32_0 : i32, i32, i32
  }
}

</mosaic_0001>

<llo_original>
// kernel: tpu_custom_call.1
$region0: #{tpu_custom_call.1}
  #allocation0 [shape = 'u32[]', space=smem, size = 0x4, offset = 0x4, fixed_abs, tag = 'smem constant byte address 0x4 - core index']
  #allocation1 [shape = 'u32[144,128]{1,0:T(1,128)}', space=vmem, size = 0x12000, scoped, tag = 'internal scratch']
  #allocation2 [shape = 's32[1]{0}', space=sflag, size = 0x4, scoped, tag = 'scratch operand']
  #allocation3 [shape = 's32[1]{0}', space=sflag, size = 0x4, scoped, tag = 'scoped memory for tpu_custom_call.1']
  #allocation4 [shape = 'u8[512]{0}', space=smem, size = 0x200, scoped, tag = 'prefetched SMEM operand 0']
  #allocation9 [shape = 's32[]', space=sflag, size = 0x4, offset = 0, fixed_abs, tag = 'sflag constant byte address 0x0 - dummy sync flag']
  #allocation10 [shape = 's32[]', space=sflag, size = 0x4, offset = 0, fixed_abs, tag = 'sflag constant byte address 0x0 - dummy sync flag']
  #allocation11 [shape = 'u32[]', space=smem, size = 0x4, offset = 0x44, fixed_abs, tag = 'smem constant byte address 0x44 - assertion arg 0']
  #allocation12 [shape = 'u32[]', space=smem, size = 0x4, offset = 0x48, fixed_abs, tag = 'smem constant byte address 0x48 - assertion arg 1']
  #allocation13 [shape = 's32[]', space=sflag, size = 0x4, offset = 0, fixed_abs, tag = 'sflag constant byte address 0x0 - dummy sync flag']
  #allocation14 [shape = 's32[]', space=sflag, size = 0x4, offset = 0, fixed_abs, tag = 'sflag constant byte address 0x0 - dummy sync flag']
  #allocation15 [shape = 's32[]', space=sflag, size = 0x4, offset = 0, fixed_abs, tag = 'sflag constant byte address 0x0 - dummy sync flag']
  #allocation16 [shape = 's32[]', space=sflag, size = 0x4, offset = 0, fixed_abs, tag = 'sflag constant byte address 0x0 - dummy sync flag']
  #allocation17 [shape = 's32[]', space=sflag, size = 0x4, offset = 0, fixed_abs, tag = 'sflag constant byte address 0x0 - dummy sync flag']
  #allocation18 [shape = 's32[]', space=sflag, size = 0x4, offset = 0, fixed_abs, tag = 'sflag constant byte address 0x0 - dummy sync flag']
  #allocation19 [shape = 's32[]', space=sflag, size = 0x4, offset = 0, fixed_abs, tag = 'sflag constant byte address 0x0 - dummy sync flag']
  #allocation20 [shape = 's32[]', space=sflag, size = 0x4, offset = 0, fixed_abs, tag = 'sflag constant byte address 0x0 - dummy sync flag']
  #allocation21 [shape = 's32[]', space=sflag, size = 0x4, offset = 0, fixed_abs, tag = 'sflag constant byte address 0x0 - dummy sync flag']
  #allocation22 [shape = 's32[]', space=sflag, size = 0x4, offset = 0, fixed_abs, tag = 'sflag constant byte address 0x0 - dummy sync flag']
  #allocation23 [shape = 's32[]', space=sflag, size = 0x4, offset = 0, fixed_abs, tag = 'sflag constant byte address 0x0 - dummy sync flag']
  #allocation24 [shape = 's32[]', space=sflag, size = 0x4, offset = 0, fixed_abs, tag = 'sflag constant byte address 0x0 - dummy sync flag']
  #allocation25 [shape = 's32[]', space=sflag, size = 0x4, offset = 0, fixed_abs, tag = 'sflag constant byte address 0x0 - dummy sync flag']
  #allocation26 [shape = 's32[]', space=sflag, size = 0x4, offset = 0, fixed_abs, tag = 'sflag constant byte address 0x0 - dummy sync flag']
  %s0 = inlined_call_operand.hbm [shape: s32[16], index: 0, kind: input, shape index: {}]
  %s1 = inlined_call_operand.hbm [shape: f32[64,128], index: 1, kind: input, shape index: {}]
  %s2 = inlined_call_operand.hbm [shape: f32[8,128], index: 2, kind: input, shape index: {}]
  %s3 = inlined_call_operand.hbm [shape: f32[2,8,128], index: 3, kind: output, shape index: {}]
  %s4 = sld [smem:[#allocation0]]
  $region157: #{tpu_custom_call.1} parent=0
    _
  %s6 = ssub.s32 1, %s4
  %s7 = scalar_select 0, %s6, %s4
  %9 = dma.hbm_to_smem %s0, 16, [#allocation4], [#allocation3]
  %10 = dma.done [#allocation3], 16
  %11 = sfence
  $region1: #{tpu_custom_call.1} parent=0
    #allocation5 [shape = 'u8[4096]{0}', space=vmem, size = 0x1000, scoped, tag = 'input window, operand 2, single buffered']
    #allocation6 [shape = 's32[2]{0}', space=sflag, size = 0x8, scoped, tag = 'scoped memory for tpu_custom_call.1']
    #allocation7 [shape = 's32[2]{0}', space=sflag, size = 0x8, scoped, tag = 'scoped memory for tpu_custom_call.1']
    #allocation8 [shape = 'u8[8192]{0}', space=vmem, size = 0x2000, scoped, tag = 'output window, operand 0']
    %12 = vsyncpa [#allocation6], 0
    %13 = vsyncpa [#allocation7], 0
    %s14 = scalar_lea.sflag [#allocation7], 1
    %15 = vsyncpa %s14, 0
    loop: start=0, step=1, limit=4
    $region2: #{tpu_custom_call.1} parent=1 // loop_pre_header
      _
    $region3: #{tpu_custom_call.1} parent=1 // loop_header
      %s17 = sphi 0, %s21
      %p18 = scmp.ge.s32.totalorder %s17, 4
      %s25 = sphi 0, %s25
      %s27 = sphi 0, %s25
      %s28 = sphi 0, %s27
      %s42 = sphi 0, %s28
      %s48 = sphi 0, %s50
      %s51 = sphi 0, %s48
      %s52 = sphi 0, %s51
      %s68 = sphi 0, %s52
    $region4: #{tpu_custom_call.1} parent=1 // loop_header_branch
      %20 = sbr.rel (%p18) target = $region8
    $region5: #{tpu_custom_call.1} parent=1 // loop_body
      %s22 = ssub.s32 %s17, 1
      %s23 = ssub.s32 %s17, 2
      %s24 = sadd.s32 %s17, 1
      %s26 = sadd.s32 %s25, 1
      %p29 = scmp.eq.s32.totalorder %s17, 1
      %p30 = scmp.ne.s32.totalorder %s25, %s27
      %p31 = scmp.eq.s32.totalorder %s17, 0
      %p32 = por %p30, %p31
      %p33 = scmp.ne.s32.totalorder %s25, %s27
      %p34 = scmp.eq.s32.totalorder %s22, 1
      %p35 = por %p33, %p34
      %p36 = scmp.ne.s32.totalorder %s27, %s28
      %p37 = scmp.eq.s32.totalorder %s22, 0
      %p38 = por %p36, %p37
      %p39 = scmp.ne.s32.totalorder %s27, %s28
      %p40 = scmp.eq.s32.totalorder %s23, 1
      %p41 = por %p39, %p40
      %p43 = scmp.ne.s32.totalorder %s28, %s42
      %p44 = scmp.eq.s32.totalorder %s23, 0
      %p45 = por %p43, %p44
      %s46 = ssub.s32 %s17, %s24
      %p47 = scmp.eq.s32.totalorder %s46, 0
      %s49 = sadd.s32 %s48, 1
      %s50 = scalar_select %p47, %s48, %s49
      %p53 = pneg %p47
      %p54 = scmp.eq.s32.totalorder %s17, 1
      %p55 = por %p53, %p54
      %p56 = scmp.ne.s32.totalorder %s48, %s51
      %p57 = scmp.eq.s32.totalorder %s17, 0
      %p58 = por %p56, %p57
      %p59 = scmp.ne.s32.totalorder %s48, %s51
      %p60 = scmp.eq.s32.totalorder %s22, 1
      %p61 = por %p59, %p60
      %p62 = scmp.ne.s32.totalorder %s51, %s52
      %p63 = scmp.eq.s32.totalorder %s22, 0
      %p64 = por %p62, %p63
      %p65 = scmp.ne.s32.totalorder %s51, %s52
      %p66 = scmp.eq.s32.totalorder %s23, 1
      %p67 = por %p65, %p66
      %p69 = scmp.ne.s32.totalorder %s52, %s68
      %p70 = scmp.eq.s32.totalorder %s23, 0
      %p71 = por %p69, %p70
      %p72 = scmp.le.s32.totalorder 1, %s17
      %p73 = scmp.lt.s32.totalorder %s17, 3
      %p74 = pnand %p72, %p73
      %p75 = pneg %p74
      // Predicated region
      $region9: #{tpu_custom_call.1} parent=5 // pred_check
        _
      $region10: #{tpu_custom_call.1} parent=5 // pred_check_branch
        %77 = sbr.rel (%p74) target = $region12
      $region11: #{tpu_custom_call.1} parent=5 // pred_region
        %s78 = ssub.s32 %s17, 1
        // Predicated region
        $region13: #{tpu_custom_call.1} parent=11 // pred_check
          %p79 = pneg %p38
        $region14: #{tpu_custom_call.1} parent=11 // pred_check_branch
          %81 = sbr.rel (%p79) target = $region16
        $region15: #{tpu_custom_call.1} parent=11 // pred_region
          %s83 = ssub.s32 128, 128
          %84 = vsyncadd [#allocation6], %s83
          %s86 = sshll.u32 [#allocation5], 4
          %s87 = int_to_ptr.vmem [resolvable:$true] %s86
          %89 = dma.hbm_to_vmem [thread:$0]  %s2, 128, %s87, [#allocation6]
        $region16: #{tpu_custom_call.1} parent=11 // pred_fallthru
          _
      $region12: #{tpu_custom_call.1} parent=5 // pred_fallthru
        _
      %p90 = scmp.lt.s32.totalorder %s17, 2
      // Predicated region
      $region17: #{tpu_custom_call.1} parent=5 // pred_check
        %p91 = pneg %p90
      $region18: #{tpu_custom_call.1} parent=5 // pred_check_branch
        %93 = sbr.rel (%p91) target = $region20
      $region19: #{tpu_custom_call.1} parent=5 // pred_region
        _
      $region20: #{tpu_custom_call.1} parent=5 // pred_fallthru
        _
      %p94 = scmp.le.s32.totalorder 1, %s17
      %p95 = scmp.lt.s32.totalorder %s17, 3
      %p96 = pnand %p94, %p95
      %p97 = pneg %p96
      // Predicated region
      $region21: #{tpu_custom_call.1} parent=5 // pred_check
        _
      $region22: #{tpu_custom_call.1} parent=5 // pred_check_branch
        %99 = sbr.rel (%p96) target = $region24
      $region23: #{tpu_custom_call.1} parent=5 // pred_region
        %s100 = ssub.s32 %s17, 1
        // Predicated region
        $region25: #{tpu_custom_call.1} parent=23 // pred_check
          %p101 = pneg %p38
        $region26: #{tpu_custom_call.1} parent=23 // pred_check_branch
          %103 = sbr.rel (%p101) target = $region28
        $region27: #{tpu_custom_call.1} parent=23 // pred_region
          %104 = dma.done [#allocation6], 128
        $region28: #{tpu_custom_call.1} parent=23 // pred_fallthru
          _
        %p105 = pneg %p38
        %p106 = pneg %p35
        %p107 = pneg %p64
        %p108 = pneg %p61
        %s109 = sand.u32 %s51, 1
        %s110 = scalar_lea.sflag [#allocation7], %s109
        %s111 = sand.u32 %s51, 1
        %s112 = smul.addr %s111, 8
        %s113 = scalar_lea.vmem [#allocation8], %s112
        %s114 = smul.u32 %s22, 8
        %s115 = sld [smem:[#allocation4 + %s114]]
        %p116 = scmp.gt.s32.totalorder %s115, 0
        %s117 = scalar_select %p116, %s115, 0
        %p118 = scmp.lt.s32.totalorder %s117, 63
        %s119 = scalar_select %p118, %s117, 63
        %s120 = smul.addr %s119, 16
        %s121 = scalar_lea.hbm %s1, %s120
        // Predicated region
        $region29: #{tpu_custom_call.1} parent=23 // pred_check
          _
        $region30: #{tpu_custom_call.1} parent=23 // pred_check_branch
          %123 = sbr.rel target = $region32
        $region31: #{tpu_custom_call.1} parent=23 // pred_region
          %124 = sst [smem:[#allocation11]] [#allocation10]
          %125 = sst [smem:[#allocation12]] [#allocation9]
        $region32: #{tpu_custom_call.1} parent=23 // pred_fallthru
          _
        %127 = shalt.err (0)
        %s129 = sshll.u32 %s113, 4
        %s130 = int_to_ptr.vmem [resolvable:$true] %s129
        %132 = dma.hbm_to_vmem [thread:$0]  %s121, 16, %s130, [#allocation2]
        %s133 = sadd.s32 %s114, 1
        %s134 = sld [smem:[#allocation4 + %s133]]
        %p135 = scmp.gt.s32.totalorder %s134, 0
        %s136 = scalar_select %p135, %s134, 0
        %p137 = scmp.lt.s32.totalorder %s136, 63
        %s138 = scalar_select %p137, %s136, 63
        %p139 = scmp.ne.s32.totalorder %s138, %s119
        // Predicated region
        $region33: #{tpu_custom_call.1} parent=23 // pred_check
          %p140 = pneg %p139
        $region34: #{tpu_custom_call.1} parent=23 // pred_check_branch
          %142 = sbr.rel (%p140) target = $region36
        $region35: #{tpu_custom_call.1} parent=23 // pred_region
          %s143 = smul.addr %s138, 16
          %s144 = scalar_lea.hbm %s1, %s143
          %s145 = scalar_lea.vmem %s113, 1 [#allocation8]
          // Predicated region
          $region37: #{tpu_custom_call.1} parent=35 // pred_check
            _
          $region38: #{tpu_custom_call.1} parent=35 // pred_check_branch
            %147 = sbr.rel target = $region40
          $region39: #{tpu_custom_call.1} parent=35 // pred_region
            %148 = sst [smem:[#allocation11]] [#allocation14]
            %149 = sst [smem:[#allocation12]] [#allocation13]
          $region40: #{tpu_custom_call.1} parent=35 // pred_fallthru
            _
          %151 = shalt.err (0)
          %s153 = sshll.u32 %s145, 4
          %s154 = int_to_ptr.vmem [resolvable:$true] %s153
          %156 = dma.hbm_to_vmem [thread:$0]  %s144, 16, %s154, [#allocation2]
        $region36: #{tpu_custom_call.1} parent=23 // pred_fallthru
          _
        %s157 = sadd.s32 %s114, 2
        %s158 = sld [smem:[#allocation4 + %s157]]
        %p159 = scmp.gt.s32.totalorder %s158, 0
        %s160 = scalar_select %p159, %s158, 0
        %p161 = scmp.lt.s32.totalorder %s160, 63
        %s162 = scalar_select %p161, %s160, 63
        %p163 = scmp.ne.s32.totalorder %s162, %s138
        // Predicated region
        $region41: #{tpu_custom_call.1} parent=23 // pred_check
          %p164 = pneg %p163
        $region42: #{tpu_custom_call.1} parent=23 // pred_check_branch
          %166 = sbr.rel (%p164) target = $region44
        $region43: #{tpu_custom_call.1} parent=23 // pred_region
          %s167 = smul.addr %s162, 16
          %s168 = scalar_lea.hbm %s1, %s167
          %s169 = scalar_lea.vmem %s113, 2 [#allocation8]
          // Predicated region
          $region45: #{tpu_custom_call.1} parent=43 // pred_check
            _
          $region46: #{tpu_custom_call.1} parent=43 // pred_check_branch
            %171 = sbr.rel target = $region48
          $region47: #{tpu_custom_call.1} parent=43 // pred_region
            %172 = sst [smem:[#allocation11]] [#allocation16]
            %173 = sst [smem:[#allocation12]] [#allocation15]
          $region48: #{tpu_custom_call.1} parent=43 // pred_fallthru
            _
          %175 = shalt.err (0)
          %s177 = sshll.u32 %s169, 4
          %s178 = int_to_ptr.vmem [resolvable:$true] %s177
          %180 = dma.hbm_to_vmem [thread:$0]  %s168, 16, %s178, [#allocation2]
        $region44: #{tpu_custom_call.1} parent=23 // pred_fallthru
          _
        %s181 = sadd.s32 %s114, 3
        %s182 = sld [smem:[#allocation4 + %s181]]
        %p183 = scmp.gt.s32.totalorder %s182, 0
        %s184 = scalar_select %p183, %s182, 0
        %p185 = scmp.lt.s32.totalorder %s184, 63
        %s186 = scalar_select %p185, %s184, 63
        %p187 = scmp.ne.s32.totalorder %s186, %s162
        // Predicated region
        $region49: #{tpu_custom_call.1} parent=23 // pred_check
          %p188 = pneg %p187
        $region50: #{tpu_custom_call.1} parent=23 // pred_check_branch
          %190 = sbr.rel (%p188) target = $region52
        $region51: #{tpu_custom_call.1} parent=23 // pred_region
          %s191 = smul.addr %s186, 16
          %s192 = scalar_lea.hbm %s1, %s191
          %s193 = scalar_lea.vmem %s113, 3 [#allocation8]
          // Predicated region
          $region53: #{tpu_custom_call.1} parent=51 // pred_check
            _
          $region54: #{tpu_custom_call.1} parent=51 // pred_check_branch
            %195 = sbr.rel target = $region56
          $region55: #{tpu_custom_call.1} parent=51 // pred_region
            %196 = sst [smem:[#allocation11]] [#allocation18]
            %197 = sst [smem:[#allocation12]] [#allocation17]
          $region56: #{tpu_custom_call.1} parent=51 // pred_fallthru
            _
          %199 = shalt.err (0)
          %s201 = sshll.u32 %s193, 4
          %s202 = int_to_ptr.vmem [resolvable:$true] %s201
          %204 = dma.hbm_to_vmem [thread:$0]  %s192, 16, %s202, [#allocation2]
        $region52: #{tpu_custom_call.1} parent=23 // pred_fallthru
          _
        %s205 = sadd.s32 %s114, 4
        %s206 = sld [smem:[#allocation4 + %s205]]
        %p207 = scmp.gt.s32.totalorder %s206, 0
        %s208 = scalar_select %p207, %s206, 0
        %p209 = scmp.lt.s32.totalorder %s208, 63
        %s210 = scalar_select %p209, %s208, 63
        %p211 = scmp.ne.s32.totalorder %s210, %s186
        // Predicated region
        $region57: #{tpu_custom_call.1} parent=23 // pred_check
          %p212 = pneg %p211
        $region58: #{tpu_custom_call.1} parent=23 // pred_check_branch
          %214 = sbr.rel (%p212) target = $region60
        $region59: #{tpu_custom_call.1} parent=23 // pred_region
          %s215 = smul.addr %s210, 16
          %s216 = scalar_lea.hbm %s1, %s215
          %s217 = scalar_lea.vmem %s113, 4 [#allocation8]
          // Predicated region
          $region61: #{tpu_custom_call.1} parent=59 // pred_check
            _
          $region62: #{tpu_custom_call.1} parent=59 // pred_check_branch
            %219 = sbr.rel target = $region64
          $region63: #{tpu_custom_call.1} parent=59 // pred_region
            %220 = sst [smem:[#allocation11]] [#allocation20]
            %221 = sst [smem:[#allocation12]] [#allocation19]
          $region64: #{tpu_custom_call.1} parent=59 // pred_fallthru
            _
          %223 = shalt.err (0)
          %s225 = sshll.u32 %s217, 4
          %s226 = int_to_ptr.vmem [resolvable:$true] %s225
          %228 = dma.hbm_to_vmem [thread:$0]  %s216, 16, %s226, [#allocation2]
        $region60: #{tpu_custom_call.1} parent=23 // pred_fallthru
          _
        %s229 = sadd.s32 %s114, 5
        %s230 = sld [smem:[#allocation4 + %s229]]
        %p231 = scmp.gt.s32.totalorder %s230, 0
        %s232 = scalar_select %p231, %s230, 0
        %p233 = scmp.lt.s32.totalorder %s232, 63
        %s234 = scalar_select %p233, %s232, 63
        %p235 = scmp.ne.s32.totalorder %s234, %s210
        // Predicated region
        $region65: #{tpu_custom_call.1} parent=23 // pred_check
          %p236 = pneg %p235
        $region66: #{tpu_custom_call.1} parent=23 // pred_check_branch
          %238 = sbr.rel (%p236) target = $region68
        $region67: #{tpu_custom_call.1} parent=23 // pred_region
          %s239 = smul.addr %s234, 16
          %s240 = scalar_lea.hbm %s1, %s239
          %s241 = scalar_lea.vmem %s113, 5 [#allocation8]
          // Predicated region
          $region69: #{tpu_custom_call.1} parent=67 // pred_check
            _
          $region70: #{tpu_custom_call.1} parent=67 // pred_check_branch
            %243 = sbr.rel target = $region72
          $region71: #{tpu_custom_call.1} parent=67 // pred_region
            %244 = sst [smem:[#allocation11]] [#allocation22]
            %245 = sst [smem:[#allocation12]] [#allocation21]
          $region72: #{tpu_custom_call.1} parent=67 // pred_fallthru
            _
          %247 = shalt.err (0)
          %s249 = sshll.u32 %s241, 4
          %s250 = int_to_ptr.vmem [resolvable:$true] %s249
          %252 = dma.hbm_to_vmem [thread:$0]  %s240, 16, %s250, [#allocation2]
        $region68: #{tpu_custom_call.1} parent=23 // pred_fallthru
          _
        %s253 = sadd.s32 %s114, 6
        %s254 = sld [smem:[#allocation4 + %s253]]
        %p255 = scmp.gt.s32.totalorder %s254, 0
        %s256 = scalar_select %p255, %s254, 0
        %p257 = scmp.lt.s32.totalorder %s256, 63
        %s258 = scalar_select %p257, %s256, 63
        %p259 = scmp.ne.s32.totalorder %s258, %s234
        // Predicated region
        $region73: #{tpu_custom_call.1} parent=23 // pred_check
          %p260 = pneg %p259
        $region74: #{tpu_custom_call.1} parent=23 // pred_check_branch
          %262 = sbr.rel (%p260) target = $region76
        $region75: #{tpu_custom_call.1} parent=23 // pred_region
          %s263 = smul.addr %s258, 16
          %s264 = scalar_lea.hbm %s1, %s263
          %s265 = scalar_lea.vmem %s113, 6 [#allocation8]
          // Predicated region
          $region77: #{tpu_custom_call.1} parent=75 // pred_check
            _
          $region78: #{tpu_custom_call.1} parent=75 // pred_check_branch
            %267 = sbr.rel target = $region80
          $region79: #{tpu_custom_call.1} parent=75 // pred_region
            %268 = sst [smem:[#allocation11]] [#allocation24]
            %269 = sst [smem:[#allocation12]] [#allocation23]
          $region80: #{tpu_custom_call.1} parent=75 // pred_fallthru
            _
          %271 = shalt.err (0)
          %s273 = sshll.u32 %s265, 4
          %s274 = int_to_ptr.vmem [resolvable:$true] %s273
          %276 = dma.hbm_to_vmem [thread:$0]  %s264, 16, %s274, [#allocation2]
        $region76: #{tpu_custom_call.1} parent=23 // pred_fallthru
          _
        %s277 = sadd.s32 %s114, 7
        %s278 = sld [smem:[#allocation4 + %s277]]
        %p279 = scmp.gt.s32.totalorder %s278, 0
        %s280 = scalar_select %p279, %s278, 0
        %p281 = scmp.lt.s32.totalorder %s280, 63
        %s282 = scalar_select %p281, %s280, 63
        %p283 = scmp.ne.s32.totalorder %s282, %s258
        // Predicated region
        $region81: #{tpu_custom_call.1} parent=23 // pred_check
          %p284 = pneg %p283
        $region82: #{tpu_custom_call.1} parent=23 // pred_check_branch
          %286 = sbr.rel (%p284) target = $region84
        $region83: #{tpu_custom_call.1} parent=23 // pred_region
          %s287 = smul.addr %s282, 16
          %s288 = scalar_lea.hbm %s1, %s287
          %s289 = scalar_lea.vmem %s113, 7 [#allocation8]
          // Predicated region
          $region85: #{tpu_custom_call.1} parent=83 // pred_check
            _
          $region86: #{tpu_custom_call.1} parent=83 // pred_check_branch
            %291 = sbr.rel target = $region88
          $region87: #{tpu_custom_call.1} parent=83 // pred_region
            %292 = sst [smem:[#allocation11]] [#allocation26]
            %293 = sst [smem:[#allocation12]] [#allocation25]
          $region88: #{tpu_custom_call.1} parent=83 // pred_fallthru
            _
          %295 = shalt.err (0)
          %s297 = sshll.u32 %s289, 4
          %s298 = int_to_ptr.vmem [resolvable:$true] %s297
          %300 = dma.hbm_to_vmem [thread:$0]  %s288, 16, %s298, [#allocation2]
        $region84: #{tpu_custom_call.1} parent=23 // pred_fallthru
          _
        %s301 = smul.u32 1, 1
        %s302 = sshll.u32 %s301, 4
        %303 = dma.done [#allocation2], %s302
        // Predicated region
        $region89: #{tpu_custom_call.1} parent=23 // pred_check
          %p304 = pneg %p139
        $region90: #{tpu_custom_call.1} parent=23 // pred_check_branch
          %306 = sbr.rel (%p304) target = $region92
        $region91: #{tpu_custom_call.1} parent=23 // pred_region
          %s307 = sshll.u32 %s301, 4
          %308 = dma.done [#allocation2], %s307
        $region92: #{tpu_custom_call.1} parent=23 // pred_fallthru
          _
        // Predicated region
        $region93: #{tpu_custom_call.1} parent=23 // pred_check
          %p309 = pneg %p163
        $region94: #{tpu_custom_call.1} parent=23 // pred_check_branch
          %311 = sbr.rel (%p309) target = $region96
        $region95: #{tpu_custom_call.1} parent=23 // pred_region
          %s312 = sshll.u32 %s301, 4
          %313 = dma.done [#allocation2], %s312
        $region96: #{tpu_custom_call.1} parent=23 // pred_fallthru
          _
        // Predicated region
        $region97: #{tpu_custom_call.1} parent=23 // pred_check
          %p314 = pneg %p187
        $region98: #{tpu_custom_call.1} parent=23 // pred_check_branch
          %316 = sbr.rel (%p314) target = $region100
        $region99: #{tpu_custom_call.1} parent=23 // pred_region
          %s317 = sshll.u32 %s301, 4
          %318 = dma.done [#allocation2], %s317
        $region100: #{tpu_custom_call.1} parent=23 // pred_fallthru
          _
        // Predicated region
        $region101: #{tpu_custom_call.1} parent=23 // pred_check
          %p319 = pneg %p211
        $region102: #{tpu_custom_call.1} parent=23 // pred_check_branch
          %321 = sbr.rel (%p319) target = $region104
        $region103: #{tpu_custom_call.1} parent=23 // pred_region
          %s322 = sshll.u32 %s301, 4
          %323 = dma.done [#allocation2], %s322
        $region104: #{tpu_custom_call.1} parent=23 // pred_fallthru
          _
        // Predicated region
        $region105: #{tpu_custom_call.1} parent=23 // pred_check
          %p324 = pneg %p235
        $region106: #{tpu_custom_call.1} parent=23 // pred_check_branch
          %326 = sbr.rel (%p324) target = $region108
        $region107: #{tpu_custom_call.1} parent=23 // pred_region
          %s327 = sshll.u32 %s301, 4
          %328 = dma.done [#allocation2], %s327
        $region108: #{tpu_custom_call.1} parent=23 // pred_fallthru
          _
        // Predicated region
        $region109: #{tpu_custom_call.1} parent=23 // pred_check
          %p329 = pneg %p259
        $region110: #{tpu_custom_call.1} parent=23 // pred_check_branch
          %331 = sbr.rel (%p329) target = $region112
        $region111: #{tpu_custom_call.1} parent=23 // pred_region
          %s332 = sshll.u32 %s301, 4
          %333 = dma.done [#allocation2], %s332
        $region112: #{tpu_custom_call.1} parent=23 // pred_fallthru
          _
        // Predicated region
        $region113: #{tpu_custom_call.1} parent=23 // pred_check
          %p334 = pneg %p283
        $region114: #{tpu_custom_call.1} parent=23 // pred_check_branch
          %336 = sbr.rel (%p334) target = $region116
        $region115: #{tpu_custom_call.1} parent=23 // pred_region
          %s337 = sshll.u32 %s301, 4
          %338 = dma.done [#allocation2], %s337
        $region116: #{tpu_custom_call.1} parent=23 // pred_fallthru
          _
        %p339 = scmp.eq.s32.totalorder %s138, %s119
        // Predicated region
        $region117: #{tpu_custom_call.1} parent=23 // pred_check
          %p340 = pneg %p339
        $region118: #{tpu_custom_call.1} parent=23 // pred_check_branch
          %342 = sbr.rel (%p340) target = $region120
        $region119: #{tpu_custom_call.1} parent=23 // pred_region
          %v343 = vld [vmem:[%s113] sm:$0x1]
          %344 = vst [vmem:[%s113 + $0x1] sm:$0x1] %v343
        $region120: #{tpu_custom_call.1} parent=23 // pred_fallthru
          _
        %p345 = scmp.eq.s32.totalorder %s162, %s138
        // Predicated region
        $region121: #{tpu_custom_call.1} parent=23 // pred_check
          %p346 = pneg %p345
        $region122: #{tpu_custom_call.1} parent=23 // pred_check_branch
          %348 = sbr.rel (%p346) target = $region124
        $region123: #{tpu_custom_call.1} parent=23 // pred_region
          %v349 = vld [vmem:[%s113 + $0x1] sm:$0x1]
          %350 = vst [vmem:[%s113 + $0x2] sm:$0x1] %v349
        $region124: #{tpu_custom_call.1} parent=23 // pred_fallthru
          _
        %p351 = scmp.eq.s32.totalorder %s186, %s162
        // Predicated region
        $region125: #{tpu_custom_call.1} parent=23 // pred_check
          %p352 = pneg %p351
        $region126: #{tpu_custom_call.1} parent=23 // pred_check_branch
          %354 = sbr.rel (%p352) target = $region128
        $region127: #{tpu_custom_call.1} parent=23 // pred_region
          %v355 = vld [vmem:[%s113 + $0x2] sm:$0x1]
          %356 = vst [vmem:[%s113 + $0x3] sm:$0x1] %v355
        $region128: #{tpu_custom_call.1} parent=23 // pred_fallthru
          _
        %p357 = scmp.eq.s32.totalorder %s210, %s186
        // Predicated region
        $region129: #{tpu_custom_call.1} parent=23 // pred_check
          %p358 = pneg %p357
        $region130: #{tpu_custom_call.1} parent=23 // pred_check_branch
          %360 = sbr.rel (%p358) target = $region132
        $region131: #{tpu_custom_call.1} parent=23 // pred_region
          %v361 = vld [vmem:[%s113 + $0x3] sm:$0x1]
          %362 = vst [vmem:[%s113 + $0x4] sm:$0x1] %v361
        $region132: #{tpu_custom_call.1} parent=23 // pred_fallthru
          _
        %p363 = scmp.eq.s32.totalorder %s234, %s210
        // Predicated region
        $region133: #{tpu_custom_call.1} parent=23 // pred_check
          %p364 = pneg %p363
        $region134: #{tpu_custom_call.1} parent=23 // pred_check_branch
          %366 = sbr.rel (%p364) target = $region136
        $region135: #{tpu_custom_call.1} parent=23 // pred_region
          %v367 = vld [vmem:[%s113 + $0x4] sm:$0x1]
          %368 = vst [vmem:[%s113 + $0x5] sm:$0x1] %v367
        $region136: #{tpu_custom_call.1} parent=23 // pred_fallthru
          _
        %p369 = scmp.eq.s32.totalorder %s258, %s234
        // Predicated region
        $region137: #{tpu_custom_call.1} parent=23 // pred_check
          %p370 = pneg %p369
        $region138: #{tpu_custom_call.1} parent=23 // pred_check_branch
          %372 = sbr.rel (%p370) target = $region140
        $region139: #{tpu_custom_call.1} parent=23 // pred_region
          %v373 = vld [vmem:[%s113 + $0x5] sm:$0x1]
          %374 = vst [vmem:[%s113 + $0x6] sm:$0x1] %v373
        $region140: #{tpu_custom_call.1} parent=23 // pred_fallthru
          _
        %p375 = scmp.eq.s32.totalorder %s282, %s258
        // Predicated region
        $region141: #{tpu_custom_call.1} parent=23 // pred_check
          %p376 = pneg %p375
        $region142: #{tpu_custom_call.1} parent=23 // pred_check_branch
          %378 = sbr.rel (%p376) target = $region144
        $region143: #{tpu_custom_call.1} parent=23 // pred_region
          %v379 = vld [vmem:[%s113 + $0x6] sm:$0x1]
          %380 = vst [vmem:[%s113 + $0x7] sm:$0x1] %v379
        $region144: #{tpu_custom_call.1} parent=23 // pred_fallthru
          _
        %v381 = vld [vmem:[%s113] sm:$0xff]
        %v382 = vld [vmem:[#allocation5] sm:$0xff]
        %v383 = vadd.f32 %v381, %v382
        %384 = vst [vmem:[%s113] sm:$0xff] %v383
        %s385 = sand.u32 %s51, 1
        %s386 = scalar_lea.sflag [#allocation7], %s385
        %s387 = sand.u32 %s51, 1
        %s388 = smul.addr %s387, 8
        %s389 = scalar_lea.vmem [#allocation8], %s388
        // Predicated region
        $region145: #{tpu_custom_call.1} parent=23 // pred_check
          %p390 = pneg %p61
        $region146: #{tpu_custom_call.1} parent=23 // pred_check_branch
          %392 = sbr.rel (%p390) target = $region148
        $region147: #{tpu_custom_call.1} parent=23 // pred_region
          %s394 = ssub.s32 128, 128
          %395 = vsyncadd %s386, %s394
          %s396 = smul.addr %s22, 128
          %s397 = scalar_lea.hbm %s3, %s396
          %s399 = sshll.u32 %s389, 4
          %s400 = int_to_ptr.vmem [resolvable:$true] %s399
          %402 = dma.vmem_to_hbm [thread:$0]  %s400, 128, %s397, %s386
        $region148: #{tpu_custom_call.1} parent=23 // pred_fallthru
          _
      $region24: #{tpu_custom_call.1} parent=5 // pred_fallthru
        _
      %p403 = scmp.le.s32.totalorder 2, %s17
      // Predicated region
      $region149: #{tpu_custom_call.1} parent=5 // pred_check
        %p404 = pneg %p403
      $region150: #{tpu_custom_call.1} parent=5 // pred_check_branch
        %406 = sbr.rel (%p404) target = $region152
      $region151: #{tpu_custom_call.1} parent=5 // pred_region
        %s407 = ssub.s32 %s17, 2
        // Predicated region
        $region153: #{tpu_custom_call.1} parent=151 // pred_check
          %p408 = pneg %p67
        $region154: #{tpu_custom_call.1} parent=151 // pred_check_branch
          %410 = sbr.rel (%p408) target = $region156
        $region155: #{tpu_custom_call.1} parent=151 // pred_region
          %s411 = sand.u32 %s52, 1
          %s412 = scalar_lea.sflag [#allocation7], %s411
          %s413 = sand.u32 %s52, 1
          %s414 = smul.addr %s413, 8
          %s415 = scalar_lea.vmem [#allocation8], %s414
          %416 = dma.done %s412, 128
        $region156: #{tpu_custom_call.1} parent=151 // pred_fallthru
          _
      $region152: #{tpu_custom_call.1} parent=5 // pred_fallthru
        _
    $region6: #{tpu_custom_call.1} parent=1 // loop_footer
      %s21 = sadd.s32 1, %s17
    $region7: #{tpu_custom_call.1} parent=1 // loop_footer_branch
      %16 = sbr.rel target = $region3
    $region8: #{tpu_custom_call.1} parent=1 // loop_exit
      _
    %417 = vsyncpa [#allocation6], 1
    %s418 = scalar_lea.sflag [#allocation6], 1
    %419 = vsyncpa %s418, 1
    %420 = vsyncpa [#allocation7], 1
    %s421 = scalar_lea.sflag [#allocation7], 1
    %422 = vsyncpa %s421, 1
  %423 = vsyncmov [#allocation2]
  %s424 = vpop.sfrf %423
  %p425 = scmp.eq.s32.totalorder %s424, 0
  %p426 = pneg %p425
  %428 = shalt.err (%p426)

</llo_original>
